<compile_context>
chip_gen: v7x
topology: tpu7x:2x2x1
jax: 0.10.0
libtpu: 0.0.40
codegen_flags: <defaults>
</compile_context>

<pallas_src>
import jax
import jax.numpy as jnp
from jax.experimental import pallas as pl
from jax.experimental.pallas import tpu as pltpu


def _cka_kernel(x_ref, y_ref, out_ref, cxx_ref, cxy_ref, cyy_ref):
    """Processes one chunk of N rows; accumulates D x D covariances in VMEM."""
    k = pl.program_id(0)

    @pl.when(k == 0)
    def _init():
        cxx_ref[...] = jnp.zeros_like(cxx_ref)
        cxy_ref[...] = jnp.zeros_like(cxy_ref)
        cyy_ref[...] = jnp.zeros_like(cyy_ref)

    x = x_ref[...]  # (tn, D), native dtype fed straight to the MXU
    y = y_ref[...]

    # Contract over the chunk (sample) axis: (tn, D) x (tn, D) -> (D, D).
    dn = (((0,), (0,)), ((), ()))
    cxx_ref[...] += jax.lax.dot_general(x, x, dn, preferred_element_type=jnp.float32)
    cxy_ref[...] += jax.lax.dot_general(x, y, dn, preferred_element_type=jnp.float32)
    cyy_ref[...] += jax.lax.dot_general(y, y, dn, preferred_element_type=jnp.float32)

    @pl.when(k == pl.num_programs(0) - 1)
    def _finalize():
        cxy = cxy_ref[...]
        cxx = cxx_ref[...]
        cyy = cyy_ref[...]
        num = jnp.sum(cxy * cxy)   # <K_x, K_y>_F
        xf2 = jnp.sum(cxx * cxx)   # ||K_x||_F^2
        yf2 = jnp.sum(cyy * cyy)   # ||K_y||_F^2
        # num / (sqrt(xf2) * sqrt(yf2)) as one fused EUP rsqrt.
        out_ref[0, 0] = num * jax.lax.rsqrt(xf2 * yf2)


def centered_kernel_analysis(x: jax.Array, y: jax.Array, *, block_n: int = 1024) -> jax.Array:
    """x, y: (N, D) arrays. Returns a scalar float32, matching the torch module."""
    assert x.shape == y.shape, 'feature shape should be equal if you use CKA'
    N, D = x.shape

    # Chunk size along N: multiple of 8 (sublane alignment), capped so the
    # double-buffered input tiles (2 inputs x 2 buffers) stay well under VMEM.
    bytes_per_elt = max(x.dtype.itemsize, 4)
    vmem_cap_rows = max(8, (8 * 1024 * 1024) // (4 * D * bytes_per_elt))
    tn = min(block_n, N, vmem_cap_rows)
    tn = max(8, ((tn + 7) // 8) * 8)
    n_pad = pl.cdiv(N, tn) * tn
    if n_pad != N:
        # Zero rows contribute nothing to X^T X / X^T Y / Y^T Y -> exact padding.
        x = jnp.pad(x, ((0, n_pad - N), (0, 0)))
        y = jnp.pad(y, ((0, n_pad - N), (0, 0)))

    out = pl.pallas_call(
        _cka_kernel,
        out_shape=jax.ShapeDtypeStruct((1, 1), jnp.float32),
        grid=(n_pad // tn,),
        in_specs=[
            pl.BlockSpec((tn, D), lambda k: (k, 0)),
            pl.BlockSpec((tn, D), lambda k: (k, 0)),
        ],
        out_specs=pl.BlockSpec(memory_space=pltpu.MemorySpace.SMEM),
        scratch_shapes=[
            pltpu.VMEM((D, D), jnp.float32),  # X^T X accumulator
            pltpu.VMEM((D, D), jnp.float32),  # X^T Y accumulator
            pltpu.VMEM((D, D), jnp.float32),  # Y^T Y accumulator
        ],
        compiler_params=pltpu.CompilerParams(
            dimension_semantics=("arbitrary",),  # reduction over N-chunks
        ),
    )(x, y)
    return out[0, 0]


def _cka_reference(x, y):
    k_x = x @ x.T
    k_y = y @ y.T
    num = jnp.sum(k_x * k_y)
    return num / (jnp.linalg.norm(k_x) * jnp.linalg.norm(k_y))


if __name__ == "__main__":
    key = jax.random.PRNGKey(0)
    kx, ky = jax.random.split(key)
    # Small feature matrices; N deliberately not a multiple of the chunk size so
    # both the zero-padding path and the multi-chunk accumulation path are hit.
    N, D = 200, 128
    x = jax.random.normal(kx, (N, D), dtype=jnp.float32)
    y = jax.random.normal(ky, (N, D), dtype=jnp.float32)

    out = centered_kernel_analysis(x, y, block_n=128)  # 2 grid steps
    out = jax.block_until_ready(out)

    ref = _cka_reference(x, y)
    assert jnp.allclose(out, ref, rtol=1e-3, atol=1e-5), (out, ref)

    print("KERNEL_OK")
</pallas_src>

<mosaic_0001>
module attributes {stable_mosaic.version = 11 : i64} {
  func.func @_cka_kernel(%arg0: i32, %arg1: memref<128x128xf32, #tpu.memory_space<vmem>>, %arg2: memref<128x128xf32, #tpu.memory_space<vmem>>, %arg3: memref<1x1xf32, #tpu.memory_space<smem>>, %arg4: memref<128x128xf32, #tpu.memory_space<vmem>>, %arg5: memref<128x128xf32, #tpu.memory_space<vmem>>, %arg6: memref<128x128xf32, #tpu.memory_space<vmem>>) attributes {dimension_semantics = [#tpu.dimension_semantics<arbitrary>], iteration_bounds = array<i64: 2>, scalar_prefetch = 0 : i64, scratch_operands = 3 : i64, tpu.core_type = #tpu.core_type<tc>, window_params = [{transform_indices = @transform_0, window_bounds = array<i64: 128, 128>}, {transform_indices = @transform_1, window_bounds = array<i64: 128, 128>}, {transform_indices = @transform_2, window_bounds = array<i64: 1, 1>}]} {
    %c0_i32 = arith.constant 0 : i32
    %0 = arith.cmpi eq, %arg0, %c0_i32 : i32
    %1 = arith.extui %0 : i1 to i32
    %c0_i32_0 = arith.constant 0 : i32
    %2 = arith.cmpi ne, %1, %c0_i32_0 : i32
    scf.if %2 {
      %cst_19 = arith.constant 0.000000e+00 : f32
      %20 = vector.broadcast %cst_19 : f32 to vector<128x128xf32>
      %c0_20 = arith.constant 0 : index
      %c0_21 = arith.constant 0 : index
      %21 = vector.load %arg4[%c0_20, %c0_21] : memref<128x128xf32, #tpu.memory_space<vmem>>, vector<128x128xf32>
      tpu.vector_store %arg4[%c0_20, %c0_21], %20 {strides = array<i32>} : memref<128x128xf32, #tpu.memory_space<vmem>>, vector<128x128xf32>,
      %cst_22 = arith.constant 0.000000e+00 : f32
      %22 = vector.broadcast %cst_22 : f32 to vector<128x128xf32>
      %c0_23 = arith.constant 0 : index
      %c0_24 = arith.constant 0 : index
      %23 = vector.load %arg5[%c0_23, %c0_24] : memref<128x128xf32, #tpu.memory_space<vmem>>, vector<128x128xf32>
      tpu.vector_store %arg5[%c0_23, %c0_24], %22 {strides = array<i32>} : memref<128x128xf32, #tpu.memory_space<vmem>>, vector<128x128xf32>,
      %cst_25 = arith.constant 0.000000e+00 : f32
      %24 = vector.broadcast %cst_25 : f32 to vector<128x128xf32>
      %c0_26 = arith.constant 0 : index
      %c0_27 = arith.constant 0 : index
      %25 = vector.load %arg6[%c0_26, %c0_27] : memref<128x128xf32, #tpu.memory_space<vmem>>, vector<128x128xf32>
      tpu.vector_store %arg6[%c0_26, %c0_27], %24 {strides = array<i32>} : memref<128x128xf32, #tpu.memory_space<vmem>>, vector<128x128xf32>,
    } else {
    }
    %c0 = arith.constant 0 : index
    %c0_1 = arith.constant 0 : index
    %3 = vector.load %arg1[%c0, %c0_1] : memref<128x128xf32, #tpu.memory_space<vmem>>, vector<128x128xf32>
    %c0_2 = arith.constant 0 : index
    %c0_3 = arith.constant 0 : index
    %4 = vector.load %arg2[%c0_2, %c0_3] : memref<128x128xf32, #tpu.memory_space<vmem>>, vector<128x128xf32>
    %c0_4 = arith.constant 0 : index
    %c0_5 = arith.constant 0 : index
    %5 = vector.load %arg4[%c0_4, %c0_5] : memref<128x128xf32, #tpu.memory_space<vmem>>, vector<128x128xf32>
    %cst = arith.constant dense<0.000000e+00> : vector<128x128xf32>
    %6 = tpu.matmul %3, %3, %cst {dimension_numbers = #tpu.dot_dimension_numbers<[0], [0], [1], [1], [0, 1, 1, 1], [], []>} : vector<128x128xf32>, vector<128x128xf32>, vector<128x128xf32> -> vector<128x128xf32>
    %7 = arith.addf %5, %6 : vector<128x128xf32>
    %c0_6 = arith.constant 0 : index
    %c0_7 = arith.constant 0 : index
    %8 = vector.load %arg4[%c0_6, %c0_7] : memref<128x128xf32, #tpu.memory_space<vmem>>, vector<128x128xf32>
    tpu.vector_store %arg4[%c0_6, %c0_7], %7 {strides = array<i32>} : memref<128x128xf32, #tpu.memory_space<vmem>>, vector<128x128xf32>,
    %c0_8 = arith.constant 0 : index
    %c0_9 = arith.constant 0 : index
    %9 = vector.load %arg5[%c0_8, %c0_9] : memref<128x128xf32, #tpu.memory_space<vmem>>, vector<128x128xf32>
    %cst_10 = arith.constant dense<0.000000e+00> : vector<128x128xf32>
    %10 = tpu.matmul %3, %4, %cst_10 {dimension_numbers = #tpu.dot_dimension_numbers<[0], [0], [1], [1], [0, 1, 1, 1], [], []>} : vector<128x128xf32>, vector<128x128xf32>, vector<128x128xf32> -> vector<128x128xf32>
    %11 = arith.addf %9, %10 : vector<128x128xf32>
    %c0_11 = arith.constant 0 : index
    %c0_12 = arith.constant 0 : index
    %12 = vector.load %arg5[%c0_11, %c0_12] : memref<128x128xf32, #tpu.memory_space<vmem>>, vector<128x128xf32>
    tpu.vector_store %arg5[%c0_11, %c0_12], %11 {strides = array<i32>} : memref<128x128xf32, #tpu.memory_space<vmem>>, vector<128x128xf32>,
    %c0_13 = arith.constant 0 : index
    %c0_14 = arith.constant 0 : index
    %13 = vector.load %arg6[%c0_13, %c0_14] : memref<128x128xf32, #tpu.memory_space<vmem>>, vector<128x128xf32>
    %cst_15 = arith.constant dense<0.000000e+00> : vector<128x128xf32>
    %14 = tpu.matmul %4, %4, %cst_15 {dimension_numbers = #tpu.dot_dimension_numbers<[0], [0], [1], [1], [0, 1, 1, 1], [], []>} : vector<128x128xf32>, vector<128x128xf32>, vector<128x128xf32> -> vector<128x128xf32>
    %15 = arith.addf %13, %14 : vector<128x128xf32>
    %c0_16 = arith.constant 0 : index
    %c0_17 = arith.constant 0 : index
    %16 = vector.load %arg6[%c0_16, %c0_17] : memref<128x128xf32, #tpu.memory_space<vmem>>, vector<128x128xf32>
    tpu.vector_store %arg6[%c0_16, %c0_17], %15 {strides = array<i32>} : memref<128x128xf32, #tpu.memory_space<vmem>>, vector<128x128xf32>,
    %c1_i32 = arith.constant 1 : i32
    %17 = arith.cmpi eq, %arg0, %c1_i32 : i32
    %18 = arith.extui %17 : i1 to i32
    %c0_i32_18 = arith.constant 0 : i32
    %19 = arith.cmpi ne, %18, %c0_i32_18 : i32
    scf.if %19 {
      %c0_19 = arith.constant 0 : index
      %c0_20 = arith.constant 0 : index
      %20 = vector.load %arg5[%c0_19, %c0_20] : memref<128x128xf32, #tpu.memory_space<vmem>>, vector<128x128xf32>
      %c0_21 = arith.constant 0 : index
      %c0_22 = arith.constant 0 : index
      %21 = vector.load %arg4[%c0_21, %c0_22] : memref<128x128xf32, #tpu.memory_space<vmem>>, vector<128x128xf32>
      %c0_23 = arith.constant 0 : index
      %c0_24 = arith.constant 0 : index
      %22 = vector.load %arg6[%c0_23, %c0_24] : memref<128x128xf32, #tpu.memory_space<vmem>>, vector<128x128xf32>
      %23 = arith.mulf %20, %20 : vector<128x128xf32>
      %24 = vector.shape_cast %23 : vector<128x128xf32> to vector<1x128x128xf32>
      %cst_25 = arith.constant dense<0.000000e+00> : vector<1xf32>
      %25 = vector.multi_reduction <add>, %24, %cst_25 [1, 2] : vector<1x128x128xf32> to vector<1xf32>
      %26 = vector.shape_cast %25 : vector<1xf32> to vector<1x1x1xf32>
      %27 = vector.extract %26[0, 0, 0] : f32 from vector<1x1x1xf32>
      %28 = arith.mulf %21, %21 : vector<128x128xf32>
      %29 = vector.shape_cast %28 : vector<128x128xf32> to vector<1x128x128xf32>
      %cst_26 = arith.constant dense<0.000000e+00> : vector<1xf32>
      %30 = vector.multi_reduction <add>, %29, %cst_26 [1, 2] : vector<1x128x128xf32> to vector<1xf32>
      %31 = vector.shape_cast %30 : vector<1xf32> to vector<1x1x1xf32>
      %32 = vector.extract %31[0, 0, 0] : f32 from vector<1x1x1xf32>
      %33 = arith.mulf %22, %22 : vector<128x128xf32>
      %34 = vector.shape_cast %33 : vector<128x128xf32> to vector<1x128x128xf32>
      %cst_27 = arith.constant dense<0.000000e+00> : vector<1xf32>
      %35 = vector.multi_reduction <add>, %34, %cst_27 [1, 2] : vector<1x128x128xf32> to vector<1xf32>
      %36 = vector.shape_cast %35 : vector<1xf32> to vector<1x1x1xf32>
      %37 = vector.extract %36[0, 0, 0] : f32 from vector<1x1x1xf32>
      %38 = arith.mulf %32, %37 : f32
      %39 = math.rsqrt %38 : f32
      %40 = arith.mulf %27, %39 : f32
      %c0_28 = arith.constant 0 : index
      %c0_29 = arith.constant 0 : index
      %41 = memref.load %arg3[%c0_28, %c0_29] : memref<1x1xf32, #tpu.memory_space<smem>>
      memref.store %40, %arg3[%c0_28, %c0_29] : memref<1x1xf32, #tpu.memory_space<smem>>
    } else {
    }
    return
  }
  func.func @transform_0(%arg0: i32) -> (i32, i32) {
    %c0_i32 = arith.constant 0 : i32
    %c0_i32_0 = arith.constant 0 : i32
    return %arg0, %c0_i32 : i32, i32
  }
  func.func @transform_1(%arg0: i32) -> (i32, i32) {
    %c0_i32 = arith.constant 0 : i32
    %c0_i32_0 = arith.constant 0 : i32
    return %arg0, %c0_i32 : i32, i32
  }
  func.func @transform_2(%arg0: i32) -> (i32, i32) {
    %c0_i32 = arith.constant 0 : i32
    %c0_i32_0 = arith.constant 0 : i32
    %c0_i32_1 = arith.constant 0 : i32
    return %c0_i32, %c0_i32_0 : i32, i32
  }
}

</mosaic_0001>

<llo_original>
// kernel: tpu_custom_call.1
$region0: #{tpu_custom_call.1}
  #allocation0 [shape = 'u32[]', space=smem, size = 0x4, offset = 0x4, fixed_abs, tag = 'smem constant byte address 0x4 - core index']
  #allocation1 [shape = 'u32[144,128]{1,0:T(1,128)}', space=vmem, size = 0x12000, scoped, tag = 'internal scratch']
  #allocation2 [shape = 'f32[128,128]{1,0:T(8,128)}', space=vmem, size = 0x10000, scoped, tag = 'scratch operand']
  #allocation3 [shape = 'f32[128,128]{1,0:T(8,128)}', space=vmem, size = 0x10000, scoped, tag = 'scratch operand']
  #allocation4 [shape = 'f32[128,128]{1,0:T(8,128)}', space=vmem, size = 0x10000, scoped, tag = 'scratch operand']
  %s0 = inlined_call_operand.hbm [shape: f32[256,128], index: 0, kind: input, shape index: {}]
  %s1 = inlined_call_operand.hbm [shape: f32[256,128], index: 1, kind: input, shape index: {}]
  %s2 = inlined_call_operand.hbm [shape: f32[1,1], index: 2, kind: output, shape index: {}]
  %s3 = sld [smem:[#allocation0]]
  $region57: #{tpu_custom_call.1} parent=0
    _
  %s5 = ssub.s32 1, %s3
  %s6 = scalar_select 0, %s5, %s3
  $region1: #{tpu_custom_call.1} parent=0
    #allocation5 [shape = 'u8[131072]{0}', space=vmem, size = 0x20000, scoped, tag = 'input window, operand 0']
    #allocation6 [shape = 's32[2]{0}', space=sflag, size = 0x8, scoped, tag = 'scoped memory for tpu_custom_call.1']
    #allocation7 [shape = 's32[2]{0}', space=sflag, size = 0x8, scoped, tag = 'scoped memory for tpu_custom_call.1']
    #allocation8 [shape = 'u8[131072]{0}', space=vmem, size = 0x20000, scoped, tag = 'input window, operand 1']
    #allocation9 [shape = 's32[2]{0}', space=sflag, size = 0x8, scoped, tag = 'scoped memory for tpu_custom_call.1']
    #allocation10 [shape = 'u8[512]{0}', space=smem, size = 0x200, scoped, tag = 'output window, operand 0, single buffered']
    %7 = vsyncpa [#allocation6], 0
    %s8 = scalar_lea.sflag [#allocation6], 1
    %9 = vsyncpa %s8, 0
    %10 = vsyncpa [#allocation9], 0
    %s11 = scalar_lea.sflag [#allocation9], 1
    %12 = vsyncpa %s11, 0
    %13 = vsyncpa [#allocation7], 0
    loop: start=0, step=1, limit=4
    $region2: #{tpu_custom_call.1} parent=1 // loop_pre_header
      _
    $region3: #{tpu_custom_call.1} parent=1 // loop_header
      %s15 = sphi 0, %s19
      %p16 = scmp.ge.s32.totalorder %s15, 4
      %s25 = sphi 0, %s27
      %s28 = sphi 0, %s25
      %s29 = sphi 0, %s28
      %s45 = sphi 0, %s29
      %s51 = sphi 0, %s53
      %s54 = sphi 0, %s51
      %s55 = sphi 0, %s54
      %s71 = sphi 0, %s55
      %s75 = sphi 0, %s75
      %s77 = sphi 0, %s75
      %s78 = sphi 0, %s77
      %s92 = sphi 0, %s78
    $region4: #{tpu_custom_call.1} parent=1 // loop_header_branch
      %18 = sbr.rel (%p16) target = $region8
    $region5: #{tpu_custom_call.1} parent=1 // loop_body
      %s20 = ssub.s32 %s15, 1
      %s21 = ssub.s32 %s15, 2
      %s22 = sadd.s32 %s15, 1
      %s23 = ssub.s32 %s15, %s22
      %p24 = scmp.eq.s32.totalorder %s23, 0
      %s26 = sadd.s32 %s25, 1
      %s27 = scalar_select %p24, %s25, %s26
      %p30 = pneg %p24
      %p31 = scmp.eq.s32.totalorder %s15, 1
      %p32 = por %p30, %p31
      %p33 = scmp.ne.s32.totalorder %s25, %s28
      %p34 = scmp.eq.s32.totalorder %s15, 0
      %p35 = por %p33, %p34
      %p36 = scmp.ne.s32.totalorder %s25, %s28
      %p37 = scmp.eq.s32.totalorder %s20, 1
      %p38 = por %p36, %p37
      %p39 = scmp.ne.s32.totalorder %s28, %s29
      %p40 = scmp.eq.s32.totalorder %s20, 0
      %p41 = por %p39, %p40
      %p42 = scmp.ne.s32.totalorder %s28, %s29
      %p43 = scmp.eq.s32.totalorder %s21, 1
      %p44 = por %p42, %p43
      %p46 = scmp.ne.s32.totalorder %s29, %s45
      %p47 = scmp.eq.s32.totalorder %s21, 0
      %p48 = por %p46, %p47
      %s49 = ssub.s32 %s15, %s22
      %p50 = scmp.eq.s32.totalorder %s49, 0
      %s52 = sadd.s32 %s51, 1
      %s53 = scalar_select %p50, %s51, %s52
      %p56 = pneg %p50
      %p57 = scmp.eq.s32.totalorder %s15, 1
      %p58 = por %p56, %p57
      %p59 = scmp.ne.s32.totalorder %s51, %s54
      %p60 = scmp.eq.s32.totalorder %s15, 0
      %p61 = por %p59, %p60
      %p62 = scmp.ne.s32.totalorder %s51, %s54
      %p63 = scmp.eq.s32.totalorder %s20, 1
      %p64 = por %p62, %p63
      %p65 = scmp.ne.s32.totalorder %s54, %s55
      %p66 = scmp.eq.s32.totalorder %s20, 0
      %p67 = por %p65, %p66
      %p68 = scmp.ne.s32.totalorder %s54, %s55
      %p69 = scmp.eq.s32.totalorder %s21, 1
      %p70 = por %p68, %p69
      %p72 = scmp.ne.s32.totalorder %s55, %s71
      %p73 = scmp.eq.s32.totalorder %s21, 0
      %p74 = por %p72, %p73
      %s76 = sadd.s32 %s75, 1
      %p79 = scmp.eq.s32.totalorder %s15, 1
      %p80 = scmp.ne.s32.totalorder %s75, %s77
      %p81 = scmp.eq.s32.totalorder %s15, 0
      %p82 = por %p80, %p81
      %p83 = scmp.ne.s32.totalorder %s75, %s77
      %p84 = scmp.eq.s32.totalorder %s20, 1
      %p85 = por %p83, %p84
      %p86 = scmp.ne.s32.totalorder %s77, %s78
      %p87 = scmp.eq.s32.totalorder %s20, 0
      %p88 = por %p86, %p87
      %p89 = scmp.ne.s32.totalorder %s77, %s78
      %p90 = scmp.eq.s32.totalorder %s21, 1
      %p91 = por %p89, %p90
      %p93 = scmp.ne.s32.totalorder %s78, %s92
      %p94 = scmp.eq.s32.totalorder %s21, 0
      %p95 = por %p93, %p94
      %p96 = scmp.le.s32.totalorder 1, %s15
      %p97 = scmp.lt.s32.totalorder %s15, 3
      %p98 = pnand %p96, %p97
      %p99 = pneg %p98
      // Predicated region
      $region9: #{tpu_custom_call.1} parent=5 // pred_check
        _
      $region10: #{tpu_custom_call.1} parent=5 // pred_check_branch
        %101 = sbr.rel (%p98) target = $region12
      $region11: #{tpu_custom_call.1} parent=5 // pred_region
        %s102 = ssub.s32 %s15, 1
      $region12: #{tpu_custom_call.1} parent=5 // pred_fallthru
        _
      %p103 = scmp.lt.s32.totalorder %s15, 2
      // Predicated region
      $region13: #{tpu_custom_call.1} parent=5 // pred_check
        %p104 = pneg %p103
      $region14: #{tpu_custom_call.1} parent=5 // pred_check_branch
        %106 = sbr.rel (%p104) target = $region16
      $region15: #{tpu_custom_call.1} parent=5 // pred_region
        // Predicated region
        $region17: #{tpu_custom_call.1} parent=15 // pred_check
          %p107 = pneg %p35
        $region18: #{tpu_custom_call.1} parent=15 // pred_check_branch
          %109 = sbr.rel (%p107) target = $region20
        $region19: #{tpu_custom_call.1} parent=15 // pred_region
          %s110 = sand.u32 %s25, 1
          %s111 = scalar_lea.sflag [#allocation6], %s110
          %s112 = sand.u32 %s25, 1
          %s113 = smul.addr %s112, 128
          %s114 = scalar_lea.vmem [#allocation5], %s113
          %s115 = smul.u32 16, %s15
          %s117 = ssub.s32 2048, 2048
          %118 = vsyncadd %s111, %s117
          %s119 = smul.addr %s115, 128
          %s120 = scalar_lea.hbm %s0, %s119
          %s121 = sshll.u32 %s114, 4
          %s122 = int_to_ptr.vmem [resolvable:$true] %s121
          %127 = dma.hbm_to_vmem [thread:$0]  %s120, 2048, %s122, %s111, 128, 128, 8
        $region20: #{tpu_custom_call.1} parent=15 // pred_fallthru
          _
        // Predicated region
        $region21: #{tpu_custom_call.1} parent=15 // pred_check
          %p128 = pneg %p61
        $region22: #{tpu_custom_call.1} parent=15 // pred_check_branch
          %130 = sbr.rel (%p128) target = $region24
        $region23: #{tpu_custom_call.1} parent=15 // pred_region
          %s131 = sand.u32 %s51, 1
          %s132 = scalar_lea.sflag [#allocation9], %s131
          %s133 = sand.u32 %s51, 1
          %s134 = smul.addr %s133, 128
          %s135 = scalar_lea.vmem [#allocation8], %s134
          %s136 = smul.u32 16, %s15
          %s138 = ssub.s32 2048, 2048
          %139 = vsyncadd %s132, %s138
          %s140 = smul.addr %s136, 128
          %s141 = scalar_lea.hbm %s1, %s140
          %s142 = sshll.u32 %s135, 4
          %s143 = int_to_ptr.vmem [resolvable:$true] %s142
          %148 = dma.hbm_to_vmem [thread:$0]  %s141, 2048, %s143, %s132, 128, 128, 8
        $region24: #{tpu_custom_call.1} parent=15 // pred_fallthru
          _
      $region16: #{tpu_custom_call.1} parent=5 // pred_fallthru
        _
      %p149 = scmp.le.s32.totalorder 1, %s15
      %p150 = scmp.lt.s32.totalorder %s15, 3
      %p151 = pnand %p149, %p150
      %p152 = pneg %p151
      // Predicated region
      $region25: #{tpu_custom_call.1} parent=5 // pred_check
        _
      $region26: #{tpu_custom_call.1} parent=5 // pred_check_branch
        %154 = sbr.rel (%p151) target = $region28
      $region27: #{tpu_custom_call.1} parent=5 // pred_region
        %s155 = ssub.s32 %s15, 1
        %s156 = sand.u32 %s28, 1
        %s157 = scalar_lea.sflag [#allocation6], %s156
        %s158 = sand.u32 %s28, 1
        %s159 = smul.addr %s158, 128
        %s160 = scalar_lea.vmem [#allocation5], %s159
        // Predicated region
        $region29: #{tpu_custom_call.1} parent=27 // pred_check
          %p161 = pneg %p41
        $region30: #{tpu_custom_call.1} parent=27 // pred_check_branch
          %163 = sbr.rel (%p161) target = $region32
        $region31: #{tpu_custom_call.1} parent=27 // pred_region
          %164 = dma.done %s157, 2048
        $region32: #{tpu_custom_call.1} parent=27 // pred_fallthru
          _
        %s165 = sand.u32 %s54, 1
        %s166 = scalar_lea.sflag [#allocation9], %s165
        %s167 = sand.u32 %s54, 1
        %s168 = smul.addr %s167, 128
        %s169 = scalar_lea.vmem [#allocation8], %s168
        // Predicated region
        $region33: #{tpu_custom_call.1} parent=27 // pred_check
          %p170 = pneg %p67
        $region34: #{tpu_custom_call.1} parent=27 // pred_check_branch
          %172 = sbr.rel (%p170) target = $region36
        $region35: #{tpu_custom_call.1} parent=27 // pred_region
          %173 = dma.done %s166, 2048
        $region36: #{tpu_custom_call.1} parent=27 // pred_fallthru
          _
        %s174 = sand.u32 %s28, 1
        %s175 = scalar_lea.sflag [#allocation6], %s174
        %s176 = sand.u32 %s28, 1
        %s177 = smul.addr %s176, 128
        %s178 = scalar_lea.vmem [#allocation5], %s177
        %p179 = pneg %p41
        %p180 = pneg %p38
        %s181 = sand.u32 %s54, 1
        %s182 = scalar_lea.sflag [#allocation9], %s181
        %s183 = sand.u32 %s54, 1
        %s184 = smul.addr %s183, 128
        %s185 = scalar_lea.vmem [#allocation8], %s184
        %p186 = pneg %p67
        %p187 = pneg %p64
        %p188 = pneg %p88
        %p189 = pneg %p85
        %s190 = smul.u32 16, %s20
        %s191 = smul.u32 16, %s20
        %p192 = scmp.eq.s32.totalorder %s20, 0
        // Predicated region
        $region37: #{tpu_custom_call.1} parent=27 // pred_check
          %p193 = pneg %p192
        $region38: #{tpu_custom_call.1} parent=27 // pred_check_branch
          %195 = sbr.rel (%p193) target = $region40
        $region39: #{tpu_custom_call.1} parent=27 // pred_region
          %196 = vst [vmem:[#allocation2] sm:$0xff] 0.0
          %197 = vst [vmem:[#allocation2 + $0x8] sm:$0xff] 0.0
          %198 = vst [vmem:[#allocation2 + $0x10] sm:$0xff] 0.0
          %199 = vst [vmem:[#allocation2 + $0x18] sm:$0xff] 0.0
          %200 = vst [vmem:[#allocation2 + $0x20] sm:$0xff] 0.0
          %201 = vst [vmem:[#allocation2 + $0x28] sm:$0xff] 0.0
          %202 = vst [vmem:[#allocation2 + $0x30] sm:$0xff] 0.0
          %203 = vst [vmem:[#allocation2 + $0x38] sm:$0xff] 0.0
          %204 = vst [vmem:[#allocation2 + $0x40] sm:$0xff] 0.0
          %205 = vst [vmem:[#allocation2 + $0x48] sm:$0xff] 0.0
          %206 = vst [vmem:[#allocation2 + $0x50] sm:$0xff] 0.0
          %207 = vst [vmem:[#allocation2 + $0x58] sm:$0xff] 0.0
          %208 = vst [vmem:[#allocation2 + $0x60] sm:$0xff] 0.0
          %209 = vst [vmem:[#allocation2 + $0x68] sm:$0xff] 0.0
          %210 = vst [vmem:[#allocation2 + $0x70] sm:$0xff] 0.0
          %211 = vst [vmem:[#allocation2 + $0x78] sm:$0xff] 0.0
          %212 = vst [vmem:[#allocation3] sm:$0xff] 0.0
          %213 = vst [vmem:[#allocation3 + $0x8] sm:$0xff] 0.0
          %214 = vst [vmem:[#allocation3 + $0x10] sm:$0xff] 0.0
          %215 = vst [vmem:[#allocation3 + $0x18] sm:$0xff] 0.0
          %216 = vst [vmem:[#allocation3 + $0x20] sm:$0xff] 0.0
          %217 = vst [vmem:[#allocation3 + $0x28] sm:$0xff] 0.0
          %218 = vst [vmem:[#allocation3 + $0x30] sm:$0xff] 0.0
          %219 = vst [vmem:[#allocation3 + $0x38] sm:$0xff] 0.0
          %220 = vst [vmem:[#allocation3 + $0x40] sm:$0xff] 0.0
          %221 = vst [vmem:[#allocation3 + $0x48] sm:$0xff] 0.0
          %222 = vst [vmem:[#allocation3 + $0x50] sm:$0xff] 0.0
          %223 = vst [vmem:[#allocation3 + $0x58] sm:$0xff] 0.0
          %224 = vst [vmem:[#allocation3 + $0x60] sm:$0xff] 0.0
          %225 = vst [vmem:[#allocation3 + $0x68] sm:$0xff] 0.0
          %226 = vst [vmem:[#allocation3 + $0x70] sm:$0xff] 0.0
          %227 = vst [vmem:[#allocation3 + $0x78] sm:$0xff] 0.0
          %228 = vst [vmem:[#allocation4] sm:$0xff] 0.0
          %229 = vst [vmem:[#allocation4 + $0x8] sm:$0xff] 0.0
          %230 = vst [vmem:[#allocation4 + $0x10] sm:$0xff] 0.0
          %231 = vst [vmem:[#allocation4 + $0x18] sm:$0xff] 0.0
          %232 = vst [vmem:[#allocation4 + $0x20] sm:$0xff] 0.0
          %233 = vst [vmem:[#allocation4 + $0x28] sm:$0xff] 0.0
          %234 = vst [vmem:[#allocation4 + $0x30] sm:$0xff] 0.0
          %235 = vst [vmem:[#allocation4 + $0x38] sm:$0xff] 0.0
          %236 = vst [vmem:[#allocation4 + $0x40] sm:$0xff] 0.0
          %237 = vst [vmem:[#allocation4 + $0x48] sm:$0xff] 0.0
          %238 = vst [vmem:[#allocation4 + $0x50] sm:$0xff] 0.0
          %239 = vst [vmem:[#allocation4 + $0x58] sm:$0xff] 0.0
          %240 = vst [vmem:[#allocation4 + $0x60] sm:$0xff] 0.0
          %241 = vst [vmem:[#allocation4 + $0x68] sm:$0xff] 0.0
          %242 = vst [vmem:[#allocation4 + $0x70] sm:$0xff] 0.0
          %243 = vst [vmem:[#allocation4 + $0x78] sm:$0xff] 0.0
        $region40: #{tpu_custom_call.1} parent=27 // pred_fallthru
          _
        %v244 = vld [vmem:[%s160] sm:$0xff]
        %v245 = vld [vmem:[%s160 + $0x8] sm:$0xff]
        %v246 = vld [vmem:[%s160 + $0x10] sm:$0xff]
        %v247 = vld [vmem:[%s160 + $0x18] sm:$0xff]
        %v248 = vld [vmem:[%s160 + $0x20] sm:$0xff]
        %v249 = vld [vmem:[%s160 + $0x28] sm:$0xff]
        %v250 = vld [vmem:[%s160 + $0x30] sm:$0xff]
        %v251 = vld [vmem:[%s160 + $0x38] sm:$0xff]
        %v252 = vld [vmem:[%s160 + $0x40] sm:$0xff]
        %v253 = vld [vmem:[%s160 + $0x48] sm:$0xff]
        %v254 = vld [vmem:[%s160 + $0x50] sm:$0xff]
        %v255 = vld [vmem:[%s160 + $0x58] sm:$0xff]
        %v256 = vld [vmem:[%s160 + $0x60] sm:$0xff]
        %v257 = vld [vmem:[%s160 + $0x68] sm:$0xff]
        %v258 = vld [vmem:[%s160 + $0x70] sm:$0xff]
        %v259 = vld [vmem:[%s160 + $0x78] sm:$0xff]
        %v260 = vld [vmem:[%s169] sm:$0xff]
        %v261 = vld [vmem:[%s169 + $0x8] sm:$0xff]
        %v262 = vld [vmem:[%s169 + $0x10] sm:$0xff]
        %v263 = vld [vmem:[%s169 + $0x18] sm:$0xff]
        %v264 = vld [vmem:[%s169 + $0x20] sm:$0xff]
        %v265 = vld [vmem:[%s169 + $0x28] sm:$0xff]
        %v266 = vld [vmem:[%s169 + $0x30] sm:$0xff]
        %v267 = vld [vmem:[%s169 + $0x38] sm:$0xff]
        %v268 = vld [vmem:[%s169 + $0x40] sm:$0xff]
        %v269 = vld [vmem:[%s169 + $0x48] sm:$0xff]
        %v270 = vld [vmem:[%s169 + $0x50] sm:$0xff]
        %v271 = vld [vmem:[%s169 + $0x58] sm:$0xff]
        %v272 = vld [vmem:[%s169 + $0x60] sm:$0xff]
        %v273 = vld [vmem:[%s169 + $0x68] sm:$0xff]
        %v274 = vld [vmem:[%s169 + $0x70] sm:$0xff]
        %v275 = vld [vmem:[%s169 + $0x78] sm:$0xff]
        %v276 = vld [vmem:[#allocation2] sm:$0xff]
        %v277 = vld [vmem:[#allocation2 + $0x8] sm:$0xff]
        %v278 = vld [vmem:[#allocation2 + $0x10] sm:$0xff]
        %v279 = vld [vmem:[#allocation2 + $0x18] sm:$0xff]
        %v280 = vld [vmem:[#allocation2 + $0x20] sm:$0xff]
        %v281 = vld [vmem:[#allocation2 + $0x28] sm:$0xff]
        %v282 = vld [vmem:[#allocation2 + $0x30] sm:$0xff]
        %v283 = vld [vmem:[#allocation2 + $0x38] sm:$0xff]
        %v284 = vld [vmem:[#allocation2 + $0x40] sm:$0xff]
        %v285 = vld [vmem:[#allocation2 + $0x48] sm:$0xff]
        %v286 = vld [vmem:[#allocation2 + $0x50] sm:$0xff]
        %v287 = vld [vmem:[#allocation2 + $0x58] sm:$0xff]
        %v288 = vld [vmem:[#allocation2 + $0x60] sm:$0xff]
        %v289 = vld [vmem:[#allocation2 + $0x68] sm:$0xff]
        %v290 = vld [vmem:[#allocation2 + $0x70] sm:$0xff]
        %v291 = vld [vmem:[#allocation2 + $0x78] sm:$0xff]
        %292 = vxpose.xlu0.b32.start [1/16] %v244, 128
        %293 = vxpose.xlu0.b32.cont [2/16] %v245, 128
        %294 = vxpose.xlu0.b32.cont [3/16] %v246, 128
        %295 = vxpose.xlu0.b32.cont [4/16] %v247, 128
        %296 = vxpose.xlu0.b32.cont [5/16] %v248, 128
        %297 = vxpose.xlu0.b32.cont [6/16] %v249, 128
        %298 = vxpose.xlu0.b32.cont [7/16] %v250, 128
        %299 = vxpose.xlu0.b32.cont [8/16] %v251, 128
        %300 = vxpose.xlu0.b32.cont [9/16] %v252, 128
        %301 = vxpose.xlu0.b32.cont [10/16] %v253, 128
        %302 = vxpose.xlu0.b32.cont [11/16] %v254, 128
        %303 = vxpose.xlu0.b32.cont [12/16] %v255, 128
        %304 = vxpose.xlu0.b32.cont [13/16] %v256, 128
        %305 = vxpose.xlu0.b32.cont [14/16] %v257, 128
        %306 = vxpose.xlu0.b32.cont [15/16] %v258, 128
        %307 = vxpose.xlu0.b32.end [16/16] %v259, 128
        %v308 = vpop.trf.xlu0
        %v309 = vpop.trf.xlu0
        %v310 = vpop.trf.xlu0
        %v311 = vpop.trf.xlu0
        %v312 = vpop.trf.xlu0
        %v313 = vpop.trf.xlu0
        %v314 = vpop.trf.xlu0
        %v315 = vpop.trf.xlu0
        %v316 = vpop.trf.xlu0
        %v317 = vpop.trf.xlu0
        %v318 = vpop.trf.xlu0
        %v319 = vpop.trf.xlu0
        %v320 = vpop.trf.xlu0
        %v321 = vpop.trf.xlu0
        %v322 = vpop.trf.xlu0
        %v323 = vpop.trf.xlu0
        %324 = vmatprep.subr.mxu0 0.0
        %325 = vmatpush1.msra.mxu0 %v244
        %326 = vmatprep.subr.mxu0 0.0
        %327 = vmatpush1.msra.mxu0 %v245
        %328 = vmatprep.subr.mxu0 0.0
        %329 = vmatpush1.msra.mxu0 %v246
        %330 = vmatprep.subr.mxu0 0.0
        %331 = vmatpush1.msra.mxu0 %v247
        %332 = vmatprep.subr.mxu0 0.0
        %333 = vmatpush1.msra.mxu0 %v248
        %334 = vmatprep.subr.mxu0 0.0
        %335 = vmatpush1.msra.mxu0 %v249
        %336 = vmatprep.subr.mxu0 0.0
        %337 = vmatpush1.msra.mxu0 %v250
        %338 = vmatprep.subr.mxu0 0.0
        %339 = vmatpush1.msra.mxu0 %v251
        %340 = vmatprep.subr.mxu0 0.0
        %341 = vmatpush1.msra.mxu0 %v252
        %342 = vmatprep.subr.mxu0 0.0
        %343 = vmatpush1.msra.mxu0 %v253
        %344 = vmatprep.subr.mxu0 0.0
        %345 = vmatpush1.msra.mxu0 %v254
        %346 = vmatprep.subr.mxu0 0.0
        %347 = vmatpush1.msra.mxu0 %v255
        %348 = vmatprep.subr.mxu0 0.0
        %349 = vmatpush1.msra.mxu0 %v256
        %350 = vmatprep.subr.mxu0 0.0
        %351 = vmatpush1.msra.mxu0 %v257
        %352 = vmatprep.subr.mxu0 0.0
        %353 = vmatpush1.msra.mxu0 %v258
        %354 = vmatprep.subr.mxu0 0.0
        %355 = vmatpush1.msra.mxu0 %v259
        %356 = vmatprep.subr.mxu0 0.0
        %357 = vmatpush1.msra.mxu0 0.0
        %358 = vmatprep.subr.mxu0 0.0
        %359 = vmatpush1.msra.mxu0 0.0
        %360 = vmatprep.subr.mxu0 0.0
        %361 = vmatpush1.msra.mxu0 0.0
        %362 = vmatprep.subr.mxu0 0.0
        %363 = vmatpush1.msra.mxu0 0.0
        %364 = vmatprep.subr.mxu0 0.0
        %365 = vmatpush1.msra.mxu0 0.0
        %366 = vmatprep.subr.mxu0 0.0
        %367 = vmatpush1.msra.mxu0 0.0
        %368 = vmatprep.subr.mxu0 0.0
        %369 = vmatpush1.msra.mxu0 0.0
        %370 = vmatprep.subr.mxu0 0.0
        %371 = vmatpush1.msra.mxu0 0.0
        %372 = vmatprep.subr.mxu0 0.0
        %373 = vmatpush1.msra.mxu0 0.0
        %374 = vmatprep.subr.mxu0 0.0
        %375 = vmatpush1.msra.mxu0 0.0
        %376 = vmatprep.subr.mxu0 0.0
        %377 = vmatpush1.msra.mxu0 0.0
        %378 = vmatprep.subr.mxu0 0.0
        %379 = vmatpush1.msra.mxu0 0.0
        %380 = vmatprep.subr.mxu0 0.0
        %381 = vmatpush1.msra.mxu0 0.0
        %382 = vmatprep.subr.mxu0 0.0
        %383 = vmatpush1.msra.mxu0 0.0
        %384 = vmatprep.subr.mxu0 0.0
        %385 = vmatpush1.msra.mxu0 0.0
        %386 = vmatprep.subr.mxu0 0.0
        %387 = vmatpush1.msra.mxu0 0.0
        %388 = vmatprep.mubr.f32.mxu0 0.0
        %389 = vmatmul.mubr.f32.gmra.mrb[0].mxu0 %v308
        %v390 = vpop.f32.mrb[0].mxu0
        %v391 = vadd.f32 0.0, %v390
        %v392 = vpop.f32.mrb[0].mxu0
        %393 = vmatprep.mubr.f32.mxu0 0.0
        %394 = vmatmul.mubr.f32.gmra.mrb[0].mxu0 %v309
        %v395 = vpop.f32.mrb[0].mxu0
        %v396 = vadd.f32 0.0, %v395
        %v397 = vpop.f32.mrb[0].mxu0
        %398 = vmatprep.mubr.f32.mxu0 0.0
        %399 = vmatmul.mubr.f32.gmra.mrb[0].mxu0 %v310
        %v400 = vpop.f32.mrb[0].mxu0
        %v401 = vadd.f32 0.0, %v400
        %v402 = vpop.f32.mrb[0].mxu0
        %403 = vmatprep.mubr.f32.mxu0 0.0
        %404 = vmatmul.mubr.f32.gmra.mrb[0].mxu0 %v311
        %v405 = vpop.f32.mrb[0].mxu0
        %v406 = vadd.f32 0.0, %v405
        %v407 = vpop.f32.mrb[0].mxu0
        %408 = vmatprep.mubr.f32.mxu0 0.0
        %409 = vmatmul.mubr.f32.gmra.mrb[0].mxu0 %v312
        %v410 = vpop.f32.mrb[0].mxu0
        %v411 = vadd.f32 0.0, %v410
        %v412 = vpop.f32.mrb[0].mxu0
        %413 = vmatprep.mubr.f32.mxu0 0.0
        %414 = vmatmul.mubr.f32.gmra.mrb[0].mxu0 %v313
        %v415 = vpop.f32.mrb[0].mxu0
        %v416 = vadd.f32 0.0, %v415
        %v417 = vpop.f32.mrb[0].mxu0
        %418 = vmatprep.mubr.f32.mxu0 0.0
        %419 = vmatmul.mubr.f32.gmra.mrb[0].mxu0 %v314
        %v420 = vpop.f32.mrb[0].mxu0
        %v421 = vadd.f32 0.0, %v420
        %v422 = vpop.f32.mrb[0].mxu0
        %423 = vmatprep.mubr.f32.mxu0 0.0
        %424 = vmatmul.mubr.f32.gmra.mrb[0].mxu0 %v315
        %v425 = vpop.f32.mrb[0].mxu0
        %v426 = vadd.f32 0.0, %v425
        %v427 = vpop.f32.mrb[0].mxu0
        %428 = vmatprep.mubr.f32.mxu0 0.0
        %429 = vmatmul.mubr.f32.gmra.mrb[0].mxu0 %v316
        %v430 = vpop.f32.mrb[0].mxu0
        %v431 = vadd.f32 0.0, %v430
        %v432 = vpop.f32.mrb[0].mxu0
        %433 = vmatprep.mubr.f32.mxu0 0.0
        %434 = vmatmul.mubr.f32.gmra.mrb[0].mxu0 %v317
        %v435 = vpop.f32.mrb[0].mxu0
        %v436 = vadd.f32 0.0, %v435
        %v437 = vpop.f32.mrb[0].mxu0
        %438 = vmatprep.mubr.f32.mxu0 0.0
        %439 = vmatmul.mubr.f32.gmra.mrb[0].mxu0 %v318
        %v440 = vpop.f32.mrb[0].mxu0
        %v441 = vadd.f32 0.0, %v440
        %v442 = vpop.f32.mrb[0].mxu0
        %443 = vmatprep.mubr.f32.mxu0 0.0
        %444 = vmatmul.mubr.f32.gmra.mrb[0].mxu0 %v319
        %v445 = vpop.f32.mrb[0].mxu0
        %v446 = vadd.f32 0.0, %v445
        %v447 = vpop.f32.mrb[0].mxu0
        %448 = vmatprep.mubr.f32.mxu0 0.0
        %449 = vmatmul.mubr.f32.gmra.mrb[0].mxu0 %v320
        %v450 = vpop.f32.mrb[0].mxu0
        %v451 = vadd.f32 0.0, %v450
        %v452 = vpop.f32.mrb[0].mxu0
        %453 = vmatprep.mubr.f32.mxu0 0.0
        %454 = vmatmul.mubr.f32.gmra.mrb[0].mxu0 %v321
        %v455 = vpop.f32.mrb[0].mxu0
        %v456 = vadd.f32 0.0, %v455
        %v457 = vpop.f32.mrb[0].mxu0
        %458 = vmatprep.mubr.f32.mxu0 0.0
        %459 = vmatmul.mubr.f32.gmra.mrb[0].mxu0 %v322
        %v460 = vpop.f32.mrb[0].mxu0
        %v461 = vadd.f32 0.0, %v460
        %v462 = vpop.f32.mrb[0].mxu0
        %463 = vmatprep.mubr.f32.mxu0 0.0
        %464 = vmatmul.mubr.f32.gmra.mrb[0].mxu0 %v323
        %v465 = vpop.f32.mrb[0].mxu0
        %v466 = vadd.f32 0.0, %v465
        %v467 = vpop.f32.mrb[0].mxu0
        %468 = vdwg.mxu0
        %v469 = vadd.f32 %v276, %v391
        %v470 = vadd.f32 %v277, %v396
        %v471 = vadd.f32 %v278, %v401
        %v472 = vadd.f32 %v279, %v406
        %v473 = vadd.f32 %v280, %v411
        %v474 = vadd.f32 %v281, %v416
        %v475 = vadd.f32 %v282, %v421
        %v476 = vadd.f32 %v283, %v426
        %v477 = vadd.f32 %v284, %v431
        %v478 = vadd.f32 %v285, %v436
        %v479 = vadd.f32 %v286, %v441
        %v480 = vadd.f32 %v287, %v446
        %v481 = vadd.f32 %v288, %v451
        %v482 = vadd.f32 %v289, %v456
        %v483 = vadd.f32 %v290, %v461
        %v484 = vadd.f32 %v291, %v466
        %485 = vst [vmem:[#allocation2] sm:$0xff] %v469
        %486 = vst [vmem:[#allocation2 + $0x8] sm:$0xff] %v470
        %487 = vst [vmem:[#allocation2 + $0x10] sm:$0xff] %v471
        %488 = vst [vmem:[#allocation2 + $0x18] sm:$0xff] %v472
        %489 = vst [vmem:[#allocation2 + $0x20] sm:$0xff] %v473
        %490 = vst [vmem:[#allocation2 + $0x28] sm:$0xff] %v474
        %491 = vst [vmem:[#allocation2 + $0x30] sm:$0xff] %v475
        %492 = vst [vmem:[#allocation2 + $0x38] sm:$0xff] %v476
        %493 = vst [vmem:[#allocation2 + $0x40] sm:$0xff] %v477
        %494 = vst [vmem:[#allocation2 + $0x48] sm:$0xff] %v478
        %495 = vst [vmem:[#allocation2 + $0x50] sm:$0xff] %v479
        %496 = vst [vmem:[#allocation2 + $0x58] sm:$0xff] %v480
        %497 = vst [vmem:[#allocation2 + $0x60] sm:$0xff] %v481
        %498 = vst [vmem:[#allocation2 + $0x68] sm:$0xff] %v482
        %499 = vst [vmem:[#allocation2 + $0x70] sm:$0xff] %v483
        %500 = vst [vmem:[#allocation2 + $0x78] sm:$0xff] %v484
        %v501 = vld [vmem:[#allocation3] sm:$0xff]
        %v502 = vld [vmem:[#allocation3 + $0x8] sm:$0xff]
        %v503 = vld [vmem:[#allocation3 + $0x10] sm:$0xff]
        %v504 = vld [vmem:[#allocation3 + $0x18] sm:$0xff]
        %v505 = vld [vmem:[#allocation3 + $0x20] sm:$0xff]
        %v506 = vld [vmem:[#allocation3 + $0x28] sm:$0xff]
        %v507 = vld [vmem:[#allocation3 + $0x30] sm:$0xff]
        %v508 = vld [vmem:[#allocation3 + $0x38] sm:$0xff]
        %v509 = vld [vmem:[#allocation3 + $0x40] sm:$0xff]
        %v510 = vld [vmem:[#allocation3 + $0x48] sm:$0xff]
        %v511 = vld [vmem:[#allocation3 + $0x50] sm:$0xff]
        %v512 = vld [vmem:[#allocation3 + $0x58] sm:$0xff]
        %v513 = vld [vmem:[#allocation3 + $0x60] sm:$0xff]
        %v514 = vld [vmem:[#allocation3 + $0x68] sm:$0xff]
        %v515 = vld [vmem:[#allocation3 + $0x70] sm:$0xff]
        %v516 = vld [vmem:[#allocation3 + $0x78] sm:$0xff]
        %517 = vmatprep.subr.mxu0 0.0
        %518 = vmatpush1.msra.mxu0 %v260
        %519 = vmatprep.subr.mxu0 0.0
        %520 = vmatpush1.msra.mxu0 %v261
        %521 = vmatprep.subr.mxu0 0.0
        %522 = vmatpush1.msra.mxu0 %v262
        %523 = vmatprep.subr.mxu0 0.0
        %524 = vmatpush1.msra.mxu0 %v263
        %525 = vmatprep.subr.mxu0 0.0
        %526 = vmatpush1.msra.mxu0 %v264
        %527 = vmatprep.subr.mxu0 0.0
        %528 = vmatpush1.msra.mxu0 %v265
        %529 = vmatprep.subr.mxu0 0.0
        %530 = vmatpush1.msra.mxu0 %v266
        %531 = vmatprep.subr.mxu0 0.0
        %532 = vmatpush1.msra.mxu0 %v267
        %533 = vmatprep.subr.mxu0 0.0
        %534 = vmatpush1.msra.mxu0 %v268
        %535 = vmatprep.subr.mxu0 0.0
        %536 = vmatpush1.msra.mxu0 %v269
        %537 = vmatprep.subr.mxu0 0.0
        %538 = vmatpush1.msra.mxu0 %v270
        %539 = vmatprep.subr.mxu0 0.0
        %540 = vmatpush1.msra.mxu0 %v271
        %541 = vmatprep.subr.mxu0 0.0
        %542 = vmatpush1.msra.mxu0 %v272
        %543 = vmatprep.subr.mxu0 0.0
        %544 = vmatpush1.msra.mxu0 %v273
        %545 = vmatprep.subr.mxu0 0.0
        %546 = vmatpush1.msra.mxu0 %v274
        %547 = vmatprep.subr.mxu0 0.0
        %548 = vmatpush1.msra.mxu0 %v275
        %549 = vmatprep.subr.mxu0 0.0
        %550 = vmatpush1.msra.mxu0 0.0
        %551 = vmatprep.subr.mxu0 0.0
        %552 = vmatpush1.msra.mxu0 0.0
        %553 = vmatprep.subr.mxu0 0.0
        %554 = vmatpush1.msra.mxu0 0.0
        %555 = vmatprep.subr.mxu0 0.0
        %556 = vmatpush1.msra.mxu0 0.0
        %557 = vmatprep.subr.mxu0 0.0
        %558 = vmatpush1.msra.mxu0 0.0
        %559 = vmatprep.subr.mxu0 0.0
        %560 = vmatpush1.msra.mxu0 0.0
        %561 = vmatprep.subr.mxu0 0.0
        %562 = vmatpush1.msra.mxu0 0.0
        %563 = vmatprep.subr.mxu0 0.0
        %564 = vmatpush1.msra.mxu0 0.0
        %565 = vmatprep.subr.mxu0 0.0
        %566 = vmatpush1.msra.mxu0 0.0
        %567 = vmatprep.subr.mxu0 0.0
        %568 = vmatpush1.msra.mxu0 0.0
        %569 = vmatprep.subr.mxu0 0.0
        %570 = vmatpush1.msra.mxu0 0.0
        %571 = vmatprep.subr.mxu0 0.0
        %572 = vmatpush1.msra.mxu0 0.0
        %573 = vmatprep.subr.mxu0 0.0
        %574 = vmatpush1.msra.mxu0 0.0
        %575 = vmatprep.subr.mxu0 0.0
        %576 = vmatpush1.msra.mxu0 0.0
        %577 = vmatprep.subr.mxu0 0.0
        %578 = vmatpush1.msra.mxu0 0.0
        %579 = vmatprep.subr.mxu0 0.0
        %580 = vmatpush1.msra.mxu0 0.0
        %581 = vmatprep.mubr.f32.mxu0 0.0
        %582 = vmatmul.mubr.f32.gmra.mrb[0].mxu0 %v308
        %v583 = vpop.f32.mrb[0].mxu0
        %v584 = vadd.f32 0.0, %v583
        %v585 = vpop.f32.mrb[0].mxu0
        %586 = vmatprep.mubr.f32.mxu0 0.0
        %587 = vmatmul.mubr.f32.gmra.mrb[0].mxu0 %v309
        %v588 = vpop.f32.mrb[0].mxu0
        %v589 = vadd.f32 0.0, %v588
        %v590 = vpop.f32.mrb[0].mxu0
        %591 = vmatprep.mubr.f32.mxu0 0.0
        %592 = vmatmul.mubr.f32.gmra.mrb[0].mxu0 %v310
        %v593 = vpop.f32.mrb[0].mxu0
        %v594 = vadd.f32 0.0, %v593
        %v595 = vpop.f32.mrb[0].mxu0
        %596 = vmatprep.mubr.f32.mxu0 0.0
        %597 = vmatmul.mubr.f32.gmra.mrb[0].mxu0 %v311
        %v598 = vpop.f32.mrb[0].mxu0
        %v599 = vadd.f32 0.0, %v598
        %v600 = vpop.f32.mrb[0].mxu0
        %601 = vmatprep.mubr.f32.mxu0 0.0
        %602 = vmatmul.mubr.f32.gmra.mrb[0].mxu0 %v312
        %v603 = vpop.f32.mrb[0].mxu0
        %v604 = vadd.f32 0.0, %v603
        %v605 = vpop.f32.mrb[0].mxu0
        %606 = vmatprep.mubr.f32.mxu0 0.0
        %607 = vmatmul.mubr.f32.gmra.mrb[0].mxu0 %v313
        %v608 = vpop.f32.mrb[0].mxu0
        %v609 = vadd.f32 0.0, %v608
        %v610 = vpop.f32.mrb[0].mxu0
        %611 = vmatprep.mubr.f32.mxu0 0.0
        %612 = vmatmul.mubr.f32.gmra.mrb[0].mxu0 %v314
        %v613 = vpop.f32.mrb[0].mxu0
        %v614 = vadd.f32 0.0, %v613
        %v615 = vpop.f32.mrb[0].mxu0
        %616 = vmatprep.mubr.f32.mxu0 0.0
        %617 = vmatmul.mubr.f32.gmra.mrb[0].mxu0 %v315
        %v618 = vpop.f32.mrb[0].mxu0
        %v619 = vadd.f32 0.0, %v618
        %v620 = vpop.f32.mrb[0].mxu0
        %621 = vmatprep.mubr.f32.mxu0 0.0
        %622 = vmatmul.mubr.f32.gmra.mrb[0].mxu0 %v316
        %v623 = vpop.f32.mrb[0].mxu0
        %v624 = vadd.f32 0.0, %v623
        %v625 = vpop.f32.mrb[0].mxu0
        %626 = vmatprep.mubr.f32.mxu0 0.0
        %627 = vmatmul.mubr.f32.gmra.mrb[0].mxu0 %v317
        %v628 = vpop.f32.mrb[0].mxu0
        %v629 = vadd.f32 0.0, %v628
        %v630 = vpop.f32.mrb[0].mxu0
        %631 = vmatprep.mubr.f32.mxu0 0.0
        %632 = vmatmul.mubr.f32.gmra.mrb[0].mxu0 %v318
        %v633 = vpop.f32.mrb[0].mxu0
        %v634 = vadd.f32 0.0, %v633
        %v635 = vpop.f32.mrb[0].mxu0
        %636 = vmatprep.mubr.f32.mxu0 0.0
        %637 = vmatmul.mubr.f32.gmra.mrb[0].mxu0 %v319
        %v638 = vpop.f32.mrb[0].mxu0
        %v639 = vadd.f32 0.0, %v638
        %v640 = vpop.f32.mrb[0].mxu0
        %641 = vmatprep.mubr.f32.mxu0 0.0
        %642 = vmatmul.mubr.f32.gmra.mrb[0].mxu0 %v320
        %v643 = vpop.f32.mrb[0].mxu0
        %v644 = vadd.f32 0.0, %v643
        %v645 = vpop.f32.mrb[0].mxu0
        %646 = vmatprep.mubr.f32.mxu0 0.0
        %647 = vmatmul.mubr.f32.gmra.mrb[0].mxu0 %v321
        %v648 = vpop.f32.mrb[0].mxu0
        %v649 = vadd.f32 0.0, %v648
        %v650 = vpop.f32.mrb[0].mxu0
        %651 = vmatprep.mubr.f32.mxu0 0.0
        %652 = vmatmul.mubr.f32.gmra.mrb[0].mxu0 %v322
        %v653 = vpop.f32.mrb[0].mxu0
        %v654 = vadd.f32 0.0, %v653
        %v655 = vpop.f32.mrb[0].mxu0
        %656 = vmatprep.mubr.f32.mxu0 0.0
        %657 = vmatmul.mubr.f32.gmra.mrb[0].mxu0 %v323
        %v658 = vpop.f32.mrb[0].mxu0
        %v659 = vadd.f32 0.0, %v658
        %v660 = vpop.f32.mrb[0].mxu0
        %661 = vdwg.mxu0
        %v662 = vadd.f32 %v501, %v584
        %v663 = vadd.f32 %v502, %v589
        %v664 = vadd.f32 %v503, %v594
        %v665 = vadd.f32 %v504, %v599
        %v666 = vadd.f32 %v505, %v604
        %v667 = vadd.f32 %v506, %v609
        %v668 = vadd.f32 %v507, %v614
        %v669 = vadd.f32 %v508, %v619
        %v670 = vadd.f32 %v509, %v624
        %v671 = vadd.f32 %v510, %v629
        %v672 = vadd.f32 %v511, %v634
        %v673 = vadd.f32 %v512, %v639
        %v674 = vadd.f32 %v513, %v644
        %v675 = vadd.f32 %v514, %v649
        %v676 = vadd.f32 %v515, %v654
        %v677 = vadd.f32 %v516, %v659
        %678 = vst [vmem:[#allocation3] sm:$0xff] %v662
        %679 = vst [vmem:[#allocation3 + $0x8] sm:$0xff] %v663
        %680 = vst [vmem:[#allocation3 + $0x10] sm:$0xff] %v664
        %681 = vst [vmem:[#allocation3 + $0x18] sm:$0xff] %v665
        %682 = vst [vmem:[#allocation3 + $0x20] sm:$0xff] %v666
        %683 = vst [vmem:[#allocation3 + $0x28] sm:$0xff] %v667
        %684 = vst [vmem:[#allocation3 + $0x30] sm:$0xff] %v668
        %685 = vst [vmem:[#allocation3 + $0x38] sm:$0xff] %v669
        %686 = vst [vmem:[#allocation3 + $0x40] sm:$0xff] %v670
        %687 = vst [vmem:[#allocation3 + $0x48] sm:$0xff] %v671
        %688 = vst [vmem:[#allocation3 + $0x50] sm:$0xff] %v672
        %689 = vst [vmem:[#allocation3 + $0x58] sm:$0xff] %v673
        %690 = vst [vmem:[#allocation3 + $0x60] sm:$0xff] %v674
        %691 = vst [vmem:[#allocation3 + $0x68] sm:$0xff] %v675
        %692 = vst [vmem:[#allocation3 + $0x70] sm:$0xff] %v676
        %693 = vst [vmem:[#allocation3 + $0x78] sm:$0xff] %v677
        %v694 = vld [vmem:[#allocation4] sm:$0xff]
        %v695 = vld [vmem:[#allocation4 + $0x8] sm:$0xff]
        %v696 = vld [vmem:[#allocation4 + $0x10] sm:$0xff]
        %v697 = vld [vmem:[#allocation4 + $0x18] sm:$0xff]
        %v698 = vld [vmem:[#allocation4 + $0x20] sm:$0xff]
        %v699 = vld [vmem:[#allocation4 + $0x28] sm:$0xff]
        %v700 = vld [vmem:[#allocation4 + $0x30] sm:$0xff]
        %v701 = vld [vmem:[#allocation4 + $0x38] sm:$0xff]
        %v702 = vld [vmem:[#allocation4 + $0x40] sm:$0xff]
        %v703 = vld [vmem:[#allocation4 + $0x48] sm:$0xff]
        %v704 = vld [vmem:[#allocation4 + $0x50] sm:$0xff]
        %v705 = vld [vmem:[#allocation4 + $0x58] sm:$0xff]
        %v706 = vld [vmem:[#allocation4 + $0x60] sm:$0xff]
        %v707 = vld [vmem:[#allocation4 + $0x68] sm:$0xff]
        %v708 = vld [vmem:[#allocation4 + $0x70] sm:$0xff]
        %v709 = vld [vmem:[#allocation4 + $0x78] sm:$0xff]
        %710 = vxpose.xlu0.b32.start [1/16] %v260, 128
        %711 = vxpose.xlu0.b32.cont [2/16] %v261, 128
        %712 = vxpose.xlu0.b32.cont [3/16] %v262, 128
        %713 = vxpose.xlu0.b32.cont [4/16] %v263, 128
        %714 = vxpose.xlu0.b32.cont [5/16] %v264, 128
        %715 = vxpose.xlu0.b32.cont [6/16] %v265, 128
        %716 = vxpose.xlu0.b32.cont [7/16] %v266, 128
        %717 = vxpose.xlu0.b32.cont [8/16] %v267, 128
        %718 = vxpose.xlu0.b32.cont [9/16] %v268, 128
        %719 = vxpose.xlu0.b32.cont [10/16] %v269, 128
        %720 = vxpose.xlu0.b32.cont [11/16] %v270, 128
        %721 = vxpose.xlu0.b32.cont [12/16] %v271, 128
        %722 = vxpose.xlu0.b32.cont [13/16] %v272, 128
        %723 = vxpose.xlu0.b32.cont [14/16] %v273, 128
        %724 = vxpose.xlu0.b32.cont [15/16] %v274, 128
        %725 = vxpose.xlu0.b32.end [16/16] %v275, 128
        %v726 = vpop.trf.xlu0
        %v727 = vpop.trf.xlu0
        %v728 = vpop.trf.xlu0
        %v729 = vpop.trf.xlu0
        %v730 = vpop.trf.xlu0
        %v731 = vpop.trf.xlu0
        %v732 = vpop.trf.xlu0
        %v733 = vpop.trf.xlu0
        %v734 = vpop.trf.xlu0
        %v735 = vpop.trf.xlu0
        %v736 = vpop.trf.xlu0
        %v737 = vpop.trf.xlu0
        %v738 = vpop.trf.xlu0
        %v739 = vpop.trf.xlu0
        %v740 = vpop.trf.xlu0
        %v741 = vpop.trf.xlu0
        %742 = vmatprep.subr.mxu0 0.0
        %743 = vmatpush1.msra.mxu0 %v260
        %744 = vmatprep.subr.mxu0 0.0
        %745 = vmatpush1.msra.mxu0 %v261
        %746 = vmatprep.subr.mxu0 0.0
        %747 = vmatpush1.msra.mxu0 %v262
        %748 = vmatprep.subr.mxu0 0.0
        %749 = vmatpush1.msra.mxu0 %v263
        %750 = vmatprep.subr.mxu0 0.0
        %751 = vmatpush1.msra.mxu0 %v264
        %752 = vmatprep.subr.mxu0 0.0
        %753 = vmatpush1.msra.mxu0 %v265
        %754 = vmatprep.subr.mxu0 0.0
        %755 = vmatpush1.msra.mxu0 %v266
        %756 = vmatprep.subr.mxu0 0.0
        %757 = vmatpush1.msra.mxu0 %v267
        %758 = vmatprep.subr.mxu0 0.0
        %759 = vmatpush1.msra.mxu0 %v268
        %760 = vmatprep.subr.mxu0 0.0
        %761 = vmatpush1.msra.mxu0 %v269
        %762 = vmatprep.subr.mxu0 0.0
        %763 = vmatpush1.msra.mxu0 %v270
        %764 = vmatprep.subr.mxu0 0.0
        %765 = vmatpush1.msra.mxu0 %v271
        %766 = vmatprep.subr.mxu0 0.0
        %767 = vmatpush1.msra.mxu0 %v272
        %768 = vmatprep.subr.mxu0 0.0
        %769 = vmatpush1.msra.mxu0 %v273
        %770 = vmatprep.subr.mxu0 0.0
        %771 = vmatpush1.msra.mxu0 %v274
        %772 = vmatprep.subr.mxu0 0.0
        %773 = vmatpush1.msra.mxu0 %v275
        %774 = vmatprep.subr.mxu0 0.0
        %775 = vmatpush1.msra.mxu0 0.0
        %776 = vmatprep.subr.mxu0 0.0
        %777 = vmatpush1.msra.mxu0 0.0
        %778 = vmatprep.subr.mxu0 0.0
        %779 = vmatpush1.msra.mxu0 0.0
        %780 = vmatprep.subr.mxu0 0.0
        %781 = vmatpush1.msra.mxu0 0.0
        %782 = vmatprep.subr.mxu0 0.0
        %783 = vmatpush1.msra.mxu0 0.0
        %784 = vmatprep.subr.mxu0 0.0
        %785 = vmatpush1.msra.mxu0 0.0
        %786 = vmatprep.subr.mxu0 0.0
        %787 = vmatpush1.msra.mxu0 0.0
        %788 = vmatprep.subr.mxu0 0.0
        %789 = vmatpush1.msra.mxu0 0.0
        %790 = vmatprep.subr.mxu0 0.0
        %791 = vmatpush1.msra.mxu0 0.0
        %792 = vmatprep.subr.mxu0 0.0
        %793 = vmatpush1.msra.mxu0 0.0
        %794 = vmatprep.subr.mxu0 0.0
        %795 = vmatpush1.msra.mxu0 0.0
        %796 = vmatprep.subr.mxu0 0.0
        %797 = vmatpush1.msra.mxu0 0.0
        %798 = vmatprep.subr.mxu0 0.0
        %799 = vmatpush1.msra.mxu0 0.0
        %800 = vmatprep.subr.mxu0 0.0
        %801 = vmatpush1.msra.mxu0 0.0
        %802 = vmatprep.subr.mxu0 0.0
        %803 = vmatpush1.msra.mxu0 0.0
        %804 = vmatprep.subr.mxu0 0.0
        %805 = vmatpush1.msra.mxu0 0.0
        %806 = vmatprep.mubr.f32.mxu0 0.0
        %807 = vmatmul.mubr.f32.gmra.mrb[0].mxu0 %v726
        %v808 = vpop.f32.mrb[0].mxu0
        %v809 = vadd.f32 0.0, %v808
        %v810 = vpop.f32.mrb[0].mxu0
        %811 = vmatprep.mubr.f32.mxu0 0.0
        %812 = vmatmul.mubr.f32.gmra.mrb[0].mxu0 %v727
        %v813 = vpop.f32.mrb[0].mxu0
        %v814 = vadd.f32 0.0, %v813
        %v815 = vpop.f32.mrb[0].mxu0
        %816 = vmatprep.mubr.f32.mxu0 0.0
        %817 = vmatmul.mubr.f32.gmra.mrb[0].mxu0 %v728
        %v818 = vpop.f32.mrb[0].mxu0
        %v819 = vadd.f32 0.0, %v818
        %v820 = vpop.f32.mrb[0].mxu0
        %821 = vmatprep.mubr.f32.mxu0 0.0
        %822 = vmatmul.mubr.f32.gmra.mrb[0].mxu0 %v729
        %v823 = vpop.f32.mrb[0].mxu0
        %v824 = vadd.f32 0.0, %v823
        %v825 = vpop.f32.mrb[0].mxu0
        %826 = vmatprep.mubr.f32.mxu0 0.0
        %827 = vmatmul.mubr.f32.gmra.mrb[0].mxu0 %v730
        %v828 = vpop.f32.mrb[0].mxu0
        %v829 = vadd.f32 0.0, %v828
        %v830 = vpop.f32.mrb[0].mxu0
        %831 = vmatprep.mubr.f32.mxu0 0.0
        %832 = vmatmul.mubr.f32.gmra.mrb[0].mxu0 %v731
        %v833 = vpop.f32.mrb[0].mxu0
        %v834 = vadd.f32 0.0, %v833
        %v835 = vpop.f32.mrb[0].mxu0
        %836 = vmatprep.mubr.f32.mxu0 0.0
        %837 = vmatmul.mubr.f32.gmra.mrb[0].mxu0 %v732
        %v838 = vpop.f32.mrb[0].mxu0
        %v839 = vadd.f32 0.0, %v838
        %v840 = vpop.f32.mrb[0].mxu0
        %841 = vmatprep.mubr.f32.mxu0 0.0
        %842 = vmatmul.mubr.f32.gmra.mrb[0].mxu0 %v733
        %v843 = vpop.f32.mrb[0].mxu0
        %v844 = vadd.f32 0.0, %v843
        %v845 = vpop.f32.mrb[0].mxu0
        %846 = vmatprep.mubr.f32.mxu0 0.0
        %847 = vmatmul.mubr.f32.gmra.mrb[0].mxu0 %v734
        %v848 = vpop.f32.mrb[0].mxu0
        %v849 = vadd.f32 0.0, %v848
        %v850 = vpop.f32.mrb[0].mxu0
        %851 = vmatprep.mubr.f32.mxu0 0.0
        %852 = vmatmul.mubr.f32.gmra.mrb[0].mxu0 %v735
        %v853 = vpop.f32.mrb[0].mxu0
        %v854 = vadd.f32 0.0, %v853
        %v855 = vpop.f32.mrb[0].mxu0
        %856 = vmatprep.mubr.f32.mxu0 0.0
        %857 = vmatmul.mubr.f32.gmra.mrb[0].mxu0 %v736
        %v858 = vpop.f32.mrb[0].mxu0
        %v859 = vadd.f32 0.0, %v858
        %v860 = vpop.f32.mrb[0].mxu0
        %861 = vmatprep.mubr.f32.mxu0 0.0
        %862 = vmatmul.mubr.f32.gmra.mrb[0].mxu0 %v737
        %v863 = vpop.f32.mrb[0].mxu0
        %v864 = vadd.f32 0.0, %v863
        %v865 = vpop.f32.mrb[0].mxu0
        %866 = vmatprep.mubr.f32.mxu0 0.0
        %867 = vmatmul.mubr.f32.gmra.mrb[0].mxu0 %v738
        %v868 = vpop.f32.mrb[0].mxu0
        %v869 = vadd.f32 0.0, %v868
        %v870 = vpop.f32.mrb[0].mxu0
        %871 = vmatprep.mubr.f32.mxu0 0.0
        %872 = vmatmul.mubr.f32.gmra.mrb[0].mxu0 %v739
        %v873 = vpop.f32.mrb[0].mxu0
        %v874 = vadd.f32 0.0, %v873
        %v875 = vpop.f32.mrb[0].mxu0
        %876 = vmatprep.mubr.f32.mxu0 0.0
        %877 = vmatmul.mubr.f32.gmra.mrb[0].mxu0 %v740
        %v878 = vpop.f32.mrb[0].mxu0
        %v879 = vadd.f32 0.0, %v878
        %v880 = vpop.f32.mrb[0].mxu0
        %881 = vmatprep.mubr.f32.mxu0 0.0
        %882 = vmatmul.mubr.f32.gmra.mrb[0].mxu0 %v741
        %v883 = vpop.f32.mrb[0].mxu0
        %v884 = vadd.f32 0.0, %v883
        %v885 = vpop.f32.mrb[0].mxu0
        %886 = vdwg.mxu0
        %v887 = vadd.f32 %v694, %v809
        %v888 = vadd.f32 %v695, %v814
        %v889 = vadd.f32 %v696, %v819
        %v890 = vadd.f32 %v697, %v824
        %v891 = vadd.f32 %v698, %v829
        %v892 = vadd.f32 %v699, %v834
        %v893 = vadd.f32 %v700, %v839
        %v894 = vadd.f32 %v701, %v844
        %v895 = vadd.f32 %v702, %v849
        %v896 = vadd.f32 %v703, %v854
        %v897 = vadd.f32 %v704, %v859
        %v898 = vadd.f32 %v705, %v864
        %v899 = vadd.f32 %v706, %v869
        %v900 = vadd.f32 %v707, %v874
        %v901 = vadd.f32 %v708, %v879
        %v902 = vadd.f32 %v709, %v884
        %903 = vst [vmem:[#allocation4] sm:$0xff] %v887
        %904 = vst [vmem:[#allocation4 + $0x8] sm:$0xff] %v888
        %905 = vst [vmem:[#allocation4 + $0x10] sm:$0xff] %v889
        %906 = vst [vmem:[#allocation4 + $0x18] sm:$0xff] %v890
        %907 = vst [vmem:[#allocation4 + $0x20] sm:$0xff] %v891
        %908 = vst [vmem:[#allocation4 + $0x28] sm:$0xff] %v892
        %909 = vst [vmem:[#allocation4 + $0x30] sm:$0xff] %v893
        %910 = vst [vmem:[#allocation4 + $0x38] sm:$0xff] %v894
        %911 = vst [vmem:[#allocation4 + $0x40] sm:$0xff] %v895
        %912 = vst [vmem:[#allocation4 + $0x48] sm:$0xff] %v896
        %913 = vst [vmem:[#allocation4 + $0x50] sm:$0xff] %v897
        %914 = vst [vmem:[#allocation4 + $0x58] sm:$0xff] %v898
        %915 = vst [vmem:[#allocation4 + $0x60] sm:$0xff] %v899
        %916 = vst [vmem:[#allocation4 + $0x68] sm:$0xff] %v900
        %917 = vst [vmem:[#allocation4 + $0x70] sm:$0xff] %v901
        %918 = vst [vmem:[#allocation4 + $0x78] sm:$0xff] %v902
        %p919 = scmp.eq.s32.totalorder %s20, 1
        // Predicated region
        $region41: #{tpu_custom_call.1} parent=27 // pred_check
          %p920 = pneg %p919
        $region42: #{tpu_custom_call.1} parent=27 // pred_check_branch
          %922 = sbr.rel (%p920) target = $region44
        $region43: #{tpu_custom_call.1} parent=27 // pred_region
          %v923 = vld [vmem:[#allocation3] sm:$0xff]
          %v924 = vld [vmem:[#allocation3 + $0x8] sm:$0xff]
          %v925 = vld [vmem:[#allocation3 + $0x10] sm:$0xff]
          %v926 = vld [vmem:[#allocation3 + $0x18] sm:$0xff]
          %v927 = vld [vmem:[#allocation3 + $0x20] sm:$0xff]
          %v928 = vld [vmem:[#allocation3 + $0x28] sm:$0xff]
          %v929 = vld [vmem:[#allocation3 + $0x30] sm:$0xff]
          %v930 = vld [vmem:[#allocation3 + $0x38] sm:$0xff]
          %v931 = vld [vmem:[#allocation3 + $0x40] sm:$0xff]
          %v932 = vld [vmem:[#allocation3 + $0x48] sm:$0xff]
          %v933 = vld [vmem:[#allocation3 + $0x50] sm:$0xff]
          %v934 = vld [vmem:[#allocation3 + $0x58] sm:$0xff]
          %v935 = vld [vmem:[#allocation3 + $0x60] sm:$0xff]
          %v936 = vld [vmem:[#allocation3 + $0x68] sm:$0xff]
          %v937 = vld [vmem:[#allocation3 + $0x70] sm:$0xff]
          %v938 = vld [vmem:[#allocation3 + $0x78] sm:$0xff]
          %v939 = vld [vmem:[#allocation2] sm:$0xff]
          %v940 = vld [vmem:[#allocation2 + $0x8] sm:$0xff]
          %v941 = vld [vmem:[#allocation2 + $0x10] sm:$0xff]
          %v942 = vld [vmem:[#allocation2 + $0x18] sm:$0xff]
          %v943 = vld [vmem:[#allocation2 + $0x20] sm:$0xff]
          %v944 = vld [vmem:[#allocation2 + $0x28] sm:$0xff]
          %v945 = vld [vmem:[#allocation2 + $0x30] sm:$0xff]
          %v946 = vld [vmem:[#allocation2 + $0x38] sm:$0xff]
          %v947 = vld [vmem:[#allocation2 + $0x40] sm:$0xff]
          %v948 = vld [vmem:[#allocation2 + $0x48] sm:$0xff]
          %v949 = vld [vmem:[#allocation2 + $0x50] sm:$0xff]
          %v950 = vld [vmem:[#allocation2 + $0x58] sm:$0xff]
          %v951 = vld [vmem:[#allocation2 + $0x60] sm:$0xff]
          %v952 = vld [vmem:[#allocation2 + $0x68] sm:$0xff]
          %v953 = vld [vmem:[#allocation2 + $0x70] sm:$0xff]
          %v954 = vld [vmem:[#allocation2 + $0x78] sm:$0xff]
          %v955 = vld [vmem:[#allocation4] sm:$0xff]
          %v956 = vld [vmem:[#allocation4 + $0x8] sm:$0xff]
          %v957 = vld [vmem:[#allocation4 + $0x10] sm:$0xff]
          %v958 = vld [vmem:[#allocation4 + $0x18] sm:$0xff]
          %v959 = vld [vmem:[#allocation4 + $0x20] sm:$0xff]
          %v960 = vld [vmem:[#allocation4 + $0x28] sm:$0xff]
          %v961 = vld [vmem:[#allocation4 + $0x30] sm:$0xff]
          %v962 = vld [vmem:[#allocation4 + $0x38] sm:$0xff]
          %v963 = vld [vmem:[#allocation4 + $0x40] sm:$0xff]
          %v964 = vld [vmem:[#allocation4 + $0x48] sm:$0xff]
          %v965 = vld [vmem:[#allocation4 + $0x50] sm:$0xff]
          %v966 = vld [vmem:[#allocation4 + $0x58] sm:$0xff]
          %v967 = vld [vmem:[#allocation4 + $0x60] sm:$0xff]
          %v968 = vld [vmem:[#allocation4 + $0x68] sm:$0xff]
          %v969 = vld [vmem:[#allocation4 + $0x70] sm:$0xff]
          %v970 = vld [vmem:[#allocation4 + $0x78] sm:$0xff]
          %v971 = vmul.f32 %v923, %v923
          %v972 = vmul.f32 %v924, %v924
          %v973 = vmul.f32 %v925, %v925
          %v974 = vmul.f32 %v926, %v926
          %v975 = vmul.f32 %v927, %v927
          %v976 = vmul.f32 %v928, %v928
          %v977 = vmul.f32 %v929, %v929
          %v978 = vmul.f32 %v930, %v930
          %v979 = vmul.f32 %v931, %v931
          %v980 = vmul.f32 %v932, %v932
          %v981 = vmul.f32 %v933, %v933
          %v982 = vmul.f32 %v934, %v934
          %v983 = vmul.f32 %v935, %v935
          %v984 = vmul.f32 %v936, %v936
          %v985 = vmul.f32 %v937, %v937
          %v986 = vmul.f32 %v938, %v938
          %v987 = vadd.f32 %v971, %v972
          %v988 = vadd.f32 %v987, %v973
          %v989 = vadd.f32 %v988, %v974
          %v990 = vadd.f32 %v989, %v975
          %v991 = vadd.f32 %v990, %v976
          %v992 = vadd.f32 %v991, %v977
          %v993 = vadd.f32 %v992, %v978
          %v994 = vadd.f32 %v993, %v979
          %v995 = vadd.f32 %v994, %v980
          %v996 = vadd.f32 %v995, %v981
          %v997 = vadd.f32 %v996, %v982
          %v998 = vadd.f32 %v997, %v983
          %v999 = vadd.f32 %v998, %v984
          %v1000 = vadd.f32 %v999, %v985
          %v1001 = vadd.f32 %v1000, %v986
          %1002 = vadd.xlane.f32.xlu0 %v1001
          %v1003 = vpop.xlane.xlu0 %1002
          %v1004 = vrot.slane %v1003, 4
          %v1005 = vadd.f32 %v1003, %v1004
          %v1006 = vrot.slane %v1005, 2
          %v1007 = vadd.f32 %v1005, %v1006
          %v1008 = vrot.slane %v1007, 1
          %v1009 = vadd.f32 %v1007, %v1008
          %s1010 = vtos %v1009
          %v1011 = vmul.f32 %v939, %v939
          %v1012 = vmul.f32 %v940, %v940
          %v1013 = vmul.f32 %v941, %v941
          %v1014 = vmul.f32 %v942, %v942
          %v1015 = vmul.f32 %v943, %v943
          %v1016 = vmul.f32 %v944, %v944
          %v1017 = vmul.f32 %v945, %v945
          %v1018 = vmul.f32 %v946, %v946
          %v1019 = vmul.f32 %v947, %v947
          %v1020 = vmul.f32 %v948, %v948
          %v1021 = vmul.f32 %v949, %v949
          %v1022 = vmul.f32 %v950, %v950
          %v1023 = vmul.f32 %v951, %v951
          %v1024 = vmul.f32 %v952, %v952
          %v1025 = vmul.f32 %v953, %v953
          %v1026 = vmul.f32 %v954, %v954
          %v1027 = vadd.f32 %v1011, %v1012
          %v1028 = vadd.f32 %v1027, %v1013
          %v1029 = vadd.f32 %v1028, %v1014
          %v1030 = vadd.f32 %v1029, %v1015
          %v1031 = vadd.f32 %v1030, %v1016
          %v1032 = vadd.f32 %v1031, %v1017
          %v1033 = vadd.f32 %v1032, %v1018
          %v1034 = vadd.f32 %v1033, %v1019
          %v1035 = vadd.f32 %v1034, %v1020
          %v1036 = vadd.f32 %v1035, %v1021
          %v1037 = vadd.f32 %v1036, %v1022
          %v1038 = vadd.f32 %v1037, %v1023
          %v1039 = vadd.f32 %v1038, %v1024
          %v1040 = vadd.f32 %v1039, %v1025
          %v1041 = vadd.f32 %v1040, %v1026
          %1042 = vadd.xlane.f32.xlu0 %v1041
          %v1043 = vpop.xlane.xlu0 %1042
          %v1044 = vrot.slane %v1043, 4
          %v1045 = vadd.f32 %v1043, %v1044
          %v1046 = vrot.slane %v1045, 2
          %v1047 = vadd.f32 %v1045, %v1046
          %v1048 = vrot.slane %v1047, 1
          %v1049 = vadd.f32 %v1047, %v1048
          %s1050 = vtos %v1049
          %v1051 = vmul.f32 %v955, %v955
          %v1052 = vmul.f32 %v956, %v956
          %v1053 = vmul.f32 %v957, %v957
          %v1054 = vmul.f32 %v958, %v958
          %v1055 = vmul.f32 %v959, %v959
          %v1056 = vmul.f32 %v960, %v960
          %v1057 = vmul.f32 %v961, %v961
          %v1058 = vmul.f32 %v962, %v962
          %v1059 = vmul.f32 %v963, %v963
          %v1060 = vmul.f32 %v964, %v964
          %v1061 = vmul.f32 %v965, %v965
          %v1062 = vmul.f32 %v966, %v966
          %v1063 = vmul.f32 %v967, %v967
          %v1064 = vmul.f32 %v968, %v968
          %v1065 = vmul.f32 %v969, %v969
          %v1066 = vmul.f32 %v970, %v970
          %v1067 = vadd.f32 %v1051, %v1052
          %v1068 = vadd.f32 %v1067, %v1053
          %v1069 = vadd.f32 %v1068, %v1054
          %v1070 = vadd.f32 %v1069, %v1055
          %v1071 = vadd.f32 %v1070, %v1056
          %v1072 = vadd.f32 %v1071, %v1057
          %v1073 = vadd.f32 %v1072, %v1058
          %v1074 = vadd.f32 %v1073, %v1059
          %v1075 = vadd.f32 %v1074, %v1060
          %v1076 = vadd.f32 %v1075, %v1061
          %v1077 = vadd.f32 %v1076, %v1062
          %v1078 = vadd.f32 %v1077, %v1063
          %v1079 = vadd.f32 %v1078, %v1064
          %v1080 = vadd.f32 %v1079, %v1065
          %v1081 = vadd.f32 %v1080, %v1066
          %1082 = vadd.xlane.f32.xlu0 %v1081
          %v1083 = vpop.xlane.xlu0 %1082
          %v1084 = vrot.slane %v1083, 4
          %v1085 = vadd.f32 %v1083, %v1084
          %v1086 = vrot.slane %v1085, 2
          %v1087 = vadd.f32 %v1085, %v1086
          %v1088 = vrot.slane %v1087, 1
          %v1089 = vadd.f32 %v1087, %v1088
          %s1090 = vtos %v1089
          %s1091 = smul.f32 %s1050, %s1090
          %v1092 = vstv %s1091
          %v1093 = vrsqrt.pop %v1092
          %s1094 = vtos %v1093
          %s1095 = smul.f32 %s1010, %s1094
          %s1096 = scalar_lea.smem [#allocation10], 0
          %1097 = sst [smem:[%s1096]] %s1095
        $region44: #{tpu_custom_call.1} parent=27 // pred_fallthru
          _
        // Predicated region
        $region45: #{tpu_custom_call.1} parent=27 // pred_check
          %p1098 = pneg %p85
        $region46: #{tpu_custom_call.1} parent=27 // pred_check_branch
          %1100 = sbr.rel (%p1098) target = $region48
        $region47: #{tpu_custom_call.1} parent=27 // pred_region
          %s1102 = ssub.s32 16, 16
          %1103 = vsyncadd [#allocation7], %s1102
          %1106 = dma.smem_to_hbm [#allocation10], 16, %s2, [#allocation7]
        $region48: #{tpu_custom_call.1} parent=27 // pred_fallthru
          _
        // Predicated region
        $region49: #{tpu_custom_call.1} parent=27 // pred_check
          %p1107 = pneg %p85
        $region50: #{tpu_custom_call.1} parent=27 // pred_check_branch
          %1109 = sbr.rel (%p1107) target = $region52
        $region51: #{tpu_custom_call.1} parent=27 // pred_region
          %1110 = dma.done [#allocation7], 16
        $region52: #{tpu_custom_call.1} parent=27 // pred_fallthru
          _
        %1111 = sfence
      $region28: #{tpu_custom_call.1} parent=5 // pred_fallthru
        _
      %p1112 = scmp.le.s32.totalorder 2, %s15
      // Predicated region
      $region53: #{tpu_custom_call.1} parent=5 // pred_check
        %p1113 = pneg %p1112
      $region54: #{tpu_custom_call.1} parent=5 // pred_check_branch
        %1115 = sbr.rel (%p1113) target = $region56
      $region55: #{tpu_custom_call.1} parent=5 // pred_region
        %s1116 = ssub.s32 %s15, 2
      $region56: #{tpu_custom_call.1} parent=5 // pred_fallthru
        _
    $region6: #{tpu_custom_call.1} parent=1 // loop_footer
      %s19 = sadd.s32 1, %s15
    $region7: #{tpu_custom_call.1} parent=1 // loop_footer_branch
      %14 = sbr.rel target = $region3
    $region8: #{tpu_custom_call.1} parent=1 // loop_exit
      _
    %1117 = vsyncpa [#allocation6], 1
    %s1118 = scalar_lea.sflag [#allocation6], 1
    %1119 = vsyncpa %s1118, 1
    %1120 = vsyncpa [#allocation9], 1
    %s1121 = scalar_lea.sflag [#allocation9], 1
    %1122 = vsyncpa %s1121, 1
    %1123 = vsyncpa [#allocation7], 1
    %s1124 = scalar_lea.sflag [#allocation7], 1
    %1125 = vsyncpa %s1124, 1

</llo_original>
